<compile_context>
chip_gen: v6e
topology: v6e:2x2x1
jax: 0.10.0
libtpu: 0.0.40
codegen_flags: <defaults>
</compile_context>

<pallas_src>
import functools
import math

import jax
import jax.numpy as jnp
from jax.experimental import pallas as pl
from jax.experimental.pallas import tpu as pltpu


def make_positional_encoding_table(d_model, max_len=5000, dtype=jnp.float32):
    """Builds the pe buffer exactly as the PyTorch __init__ does: (max_len, 1, d_model)."""
    position = jnp.arange(max_len, dtype=jnp.float32)[:, None]                  # (max_len, 1)
    div_term = jnp.exp(
        jnp.arange(0, d_model, 2, dtype=jnp.float32) * (-math.log(10000.0) / d_model)
    )                                                                           # (d_model/2,)
    pe = jnp.zeros((max_len, d_model), jnp.float32)
    pe = pe.at[:, 0::2].set(jnp.sin(position * div_term))
    pe = pe.at[:, 1::2].set(jnp.cos(position * div_term))
    return pe[:, None, :].astype(dtype)                                         # (max_len, 1, d_model)


def _pe_kernel(*refs, batch, rate, train):
    # refs: (x_ref, pe_ref[, bits_ref], o_ref)
    if train and rate > 0.0:
        x_ref, pe_ref, bits_ref, o_ref = refs
    else:
        x_ref, pe_ref, o_ref = refs
        bits_ref = None

    x = x_ref[...]                                   # (ts, B*D), compute in x's dtype
    pe = pe_ref[...].astype(x.dtype)                 # (ts, D)
    y = x + jnp.tile(pe, (1, batch))                 # broadcast pe across batch lanes

    if bits_ref is not None:
        # keep iff bits >= rate * 2^32  ->  P(keep) = 1 - rate ; inverted-dropout scale.
        thr = jnp.uint32(min(int(round(rate * 2.0 ** 32)), 2 ** 32 - 1))
        keep = bits_ref[...] >= thr
        scale = jnp.asarray(1.0 / (1.0 - rate), x.dtype)
        y = jnp.where(keep, y * scale, jnp.zeros((), x.dtype))

    o_ref[...] = y.astype(o_ref.dtype)


def _choose_seq_tile(S, row_bytes, block_budget_bytes=16 << 20):
    """Largest seq tile (multiple of 8) whose double-buffered blocks fit the budget."""
    if S <= 8:
        return S                                     # block dim == full array dim is legal
    ts = block_budget_bytes // (2 * row_bytes)       # 2x: double-buffered pipeline buffers
    ts = max(8, (ts // 8) * 8)
    # Keep the grid length >= 2 so v7x's two TensorCores both get work.
    half = ((S + 1) // 2 + 7) // 8 * 8
    return int(min(ts, half))


def positional_encoding_forward(x, pe, *, dropout_rate=0.1, train=False, rng=None):
    """x: (S, B, D), pe: (max_len, 1, D). Returns dropout(x + pe[:S])."""
    S, B, D = x.shape
    max_len = pe.shape[0]
    assert S <= max_len

    x2 = x.reshape(S, B * D)            # free view, lane-dense last dim
    pe2 = pe.reshape(max_len, D)        # free view (drops the size-1 batch axis)

    use_dropout = bool(train) and float(dropout_rate) > 0.0

    itemsize = x.dtype.itemsize
    row_bytes = (B * D * (2 * itemsize + (4 if use_dropout else 0))
                 + D * pe.dtype.itemsize)
    ts = _choose_seq_tile(S, row_bytes)
    grid = (pl.cdiv(S, ts),)            # partial tail block handled by Pallas masking

    in_arrays = [x2, pe2]
    in_specs = [
        pl.BlockSpec((ts, B * D), lambda i: (i, 0)),
        pl.BlockSpec((ts, D), lambda i: (i, 0)),     # pe[:S] slice folded into index_map
    ]
    if use_dropout:
        if rng is None:
            rng = jax.random.PRNGKey(0)
        bits = jax.random.bits(rng, (S, B * D), dtype=jnp.uint32)
        in_arrays.append(bits)
        in_specs.append(pl.BlockSpec((ts, B * D), lambda i: (i, 0)))

    kernel = functools.partial(
        _pe_kernel, batch=B, rate=float(dropout_rate), train=bool(train))

    out2 = pl.pallas_call(
        kernel,
        out_shape=jax.ShapeDtypeStruct((S, B * D), x.dtype),
        grid=grid,
        in_specs=in_specs,
        out_specs=pl.BlockSpec((ts, B * D), lambda i: (i, 0)),
        compiler_params=pltpu.CompilerParams(
            dimension_semantics=("parallel",),
            vmem_limit_bytes=32 << 20,
        ),
    )(*in_arrays)
    return out2.reshape(S, B, D)


if __name__ == "__main__":
    # Small shapes consistent with the module's forward: x is (seq, batch, d_model).
    S, B, D = 16, 2, 32
    key = jax.random.PRNGKey(0)
    x = jax.random.normal(key, (S, B, D), dtype=jnp.float32)

    pe = make_positional_encoding_table(d_model=D, max_len=5000)
    ref = x + pe[:S]                      # broadcast over batch axis

    # Eval mode (dropout is identity) -> must match the pure-JAX reference exactly.
    out = positional_encoding_forward(x, pe, dropout_rate=0.1, train=False)
    out = jax.block_until_ready(out)
    assert out.shape == (S, B, D)
    assert jnp.allclose(out, ref, atol=1e-6, rtol=1e-6), "eval mismatch vs reference"

    # Training mode: inverted dropout. Kept entries equal ref/(1-p); dropped are 0.
    p = 0.1
    out_tr = positional_encoding_forward(
        x, pe, dropout_rate=p, train=True, rng=jax.random.PRNGKey(123))
    out_tr = jax.block_until_ready(out_tr)
    kept = out_tr != 0.0
    expected = jnp.where(kept, ref * jnp.float32(1.0 / (1.0 - p)), 0.0)
    assert jnp.allclose(out_tr, expected, atol=1e-6, rtol=1e-6), "dropout scaling mismatch"
    frac = float(jnp.mean(kept.astype(jnp.float32)))
    assert 0.6 <= frac <= 1.0, f"unexpected keep fraction {frac}"

    print("KERNEL_OK")
</pallas_src>

<mosaic_0001>
module attributes {stable_mosaic.version = 11 : i64} {
  func.func @_pe_kernel(%arg0: i32, %arg1: memref<8x64xf32, #tpu.memory_space<vmem>>, %arg2: memref<8x32xf32, #tpu.memory_space<vmem>>, %arg3: memref<8x64xf32, #tpu.memory_space<vmem>>) attributes {dimension_semantics = [#tpu.dimension_semantics<parallel>], iteration_bounds = array<i64: 2>, scalar_prefetch = 0 : i64, scratch_operands = 0 : i64, tpu.core_type = #tpu.core_type<tc>, window_params = [{transform_indices = @transform_0, window_bounds = array<i64: 8, 64>}, {transform_indices = @transform_1, window_bounds = array<i64: 8, 32>}, {transform_indices = @transform_2, window_bounds = array<i64: 8, 64>}]} {
    %c0 = arith.constant 0 : index
    %c0_0 = arith.constant 0 : index
    %0 = vector.load %arg1[%c0, %c0_0] : memref<8x64xf32, #tpu.memory_space<vmem>>, vector<8x64xf32>
    %c0_1 = arith.constant 0 : index
    %c0_2 = arith.constant 0 : index
    %1 = vector.load %arg2[%c0_1, %c0_2] : memref<8x32xf32, #tpu.memory_space<vmem>>, vector<8x32xf32>
    %2 = tpu.concatenate %1, %1 in 1 : vector<8x32xf32>, vector<8x32xf32> -> vector<8x64xf32>
    %3 = arith.addf %0, %2 : vector<8x64xf32>
    %c0_3 = arith.constant 0 : index
    %c0_4 = arith.constant 0 : index
    %4 = vector.load %arg3[%c0_3, %c0_4] : memref<8x64xf32, #tpu.memory_space<vmem>>, vector<8x64xf32>
    tpu.vector_store %arg3[%c0_3, %c0_4], %3 {strides = array<i32>} : memref<8x64xf32, #tpu.memory_space<vmem>>, vector<8x64xf32>,
    return
  }
  func.func @transform_0(%arg0: i32) -> (i32, i32) {
    %c0_i32 = arith.constant 0 : i32
    %c0_i32_0 = arith.constant 0 : i32
    return %arg0, %c0_i32 : i32, i32
  }
  func.func @transform_1(%arg0: i32) -> (i32, i32) {
    %c0_i32 = arith.constant 0 : i32
    %c0_i32_0 = arith.constant 0 : i32
    return %arg0, %c0_i32 : i32, i32
  }
  func.func @transform_2(%arg0: i32) -> (i32, i32) {
    %c0_i32 = arith.constant 0 : i32
    %c0_i32_0 = arith.constant 0 : i32
    return %arg0, %c0_i32 : i32, i32
  }
}

</mosaic_0001>

<llo_original>
// kernel: tpu_custom_call.1
$region0: #{tpu_custom_call.1}
  #allocation0 [shape = 'u32[]', space=smem, size = 0x4, offset = 0x4, fixed_abs, tag = 'smem constant byte address 0x4 - core index']
  #allocation1 [shape = 'u32[144,128]{1,0:T(1,128)}', space=vmem, size = 0x12000, scoped, tag = 'internal scratch']
  %s0 = inlined_call_operand.vmem [shape: f32[16,64], index: 0, kind: input, shape index: {}]
  %s1 = inlined_call_operand.vmem [shape: f32[5000,32], index: 1, kind: input, shape index: {}]
  %s2 = inlined_call_operand.hbm [shape: f32[16,64], index: 2, kind: output, shape index: {}]
  %s3 = sld [smem:[#allocation0]]
  $region41: #{tpu_custom_call.1} parent=0
    _
  %s5 = ssub.s32 1, %s3
  %s6 = scalar_select 0, %s5, %s3
  $region1: #{tpu_custom_call.1} parent=0
    #allocation2 [shape = 'u8[8192]{0}', space=vmem, size = 0x2000, scoped, tag = 'output window, operand 0']
    #allocation3 [shape = 's32[2]{0}', space=sflag, size = 0x8, scoped, tag = 'scoped memory for tpu_custom_call.1']
    %7 = vsyncpa [#allocation3], 0
    %s8 = scalar_lea.sflag [#allocation3], 1
    %9 = vsyncpa %s8, 0
    loop: start=0, step=1, limit=4
    $region2: #{tpu_custom_call.1} parent=1 // loop_pre_header
      _
    $region3: #{tpu_custom_call.1} parent=1 // loop_header
      %s11 = sphi 0, %s15
      %p12 = scmp.ge.s32.totalorder %s11, 4
      %s21 = sphi 0, %s23
      %s24 = sphi 0, %s21
      %s25 = sphi 0, %s24
      %s41 = sphi 0, %s25
      %s47 = sphi 0, %s49
      %s50 = sphi 0, %s47
      %s51 = sphi 0, %s50
      %s67 = sphi 0, %s51
      %s73 = sphi 0, %s75
      %s76 = sphi 0, %s73
      %s77 = sphi 0, %s76
      %s93 = sphi 0, %s77
    $region4: #{tpu_custom_call.1} parent=1 // loop_header_branch
      %14 = sbr.rel (%p12) target = $region8
    $region5: #{tpu_custom_call.1} parent=1 // loop_body
      %s16 = ssub.s32 %s11, 1
      %s17 = ssub.s32 %s11, 2
      %s18 = sadd.s32 %s11, 1
      %s19 = ssub.s32 %s11, %s18
      %p20 = scmp.eq.s32.totalorder %s19, 0
      %s22 = sadd.s32 %s21, 1
      %s23 = scalar_select %p20, %s21, %s22
      %p26 = pneg %p20
      %p27 = scmp.eq.s32.totalorder %s11, 1
      %p28 = por %p26, %p27
      %p29 = scmp.ne.s32.totalorder %s21, %s24
      %p30 = scmp.eq.s32.totalorder %s11, 0
      %p31 = por %p29, %p30
      %p32 = scmp.ne.s32.totalorder %s21, %s24
      %p33 = scmp.eq.s32.totalorder %s16, 1
      %p34 = por %p32, %p33
      %p35 = scmp.ne.s32.totalorder %s24, %s25
      %p36 = scmp.eq.s32.totalorder %s16, 0
      %p37 = por %p35, %p36
      %p38 = scmp.ne.s32.totalorder %s24, %s25
      %p39 = scmp.eq.s32.totalorder %s17, 1
      %p40 = por %p38, %p39
      %p42 = scmp.ne.s32.totalorder %s25, %s41
      %p43 = scmp.eq.s32.totalorder %s17, 0
      %p44 = por %p42, %p43
      %s45 = ssub.s32 %s11, %s18
      %p46 = scmp.eq.s32.totalorder %s45, 0
      %s48 = sadd.s32 %s47, 1
      %s49 = scalar_select %p46, %s47, %s48
      %p52 = pneg %p46
      %p53 = scmp.eq.s32.totalorder %s11, 1
      %p54 = por %p52, %p53
      %p55 = scmp.ne.s32.totalorder %s47, %s50
      %p56 = scmp.eq.s32.totalorder %s11, 0
      %p57 = por %p55, %p56
      %p58 = scmp.ne.s32.totalorder %s47, %s50
      %p59 = scmp.eq.s32.totalorder %s16, 1
      %p60 = por %p58, %p59
      %p61 = scmp.ne.s32.totalorder %s50, %s51
      %p62 = scmp.eq.s32.totalorder %s16, 0
      %p63 = por %p61, %p62
      %p64 = scmp.ne.s32.totalorder %s50, %s51
      %p65 = scmp.eq.s32.totalorder %s17, 1
      %p66 = por %p64, %p65
      %p68 = scmp.ne.s32.totalorder %s51, %s67
      %p69 = scmp.eq.s32.totalorder %s17, 0
      %p70 = por %p68, %p69
      %s71 = ssub.s32 %s11, %s18
      %p72 = scmp.eq.s32.totalorder %s71, 0
      %s74 = sadd.s32 %s73, 1
      %s75 = scalar_select %p72, %s73, %s74
      %p78 = pneg %p72
      %p79 = scmp.eq.s32.totalorder %s11, 1
      %p80 = por %p78, %p79
      %p81 = scmp.ne.s32.totalorder %s73, %s76
      %p82 = scmp.eq.s32.totalorder %s11, 0
      %p83 = por %p81, %p82
      %p84 = scmp.ne.s32.totalorder %s73, %s76
      %p85 = scmp.eq.s32.totalorder %s16, 1
      %p86 = por %p84, %p85
      %p87 = scmp.ne.s32.totalorder %s76, %s77
      %p88 = scmp.eq.s32.totalorder %s16, 0
      %p89 = por %p87, %p88
      %p90 = scmp.ne.s32.totalorder %s76, %s77
      %p91 = scmp.eq.s32.totalorder %s17, 1
      %p92 = por %p90, %p91
      %p94 = scmp.ne.s32.totalorder %s77, %s93
      %p95 = scmp.eq.s32.totalorder %s17, 0
      %p96 = por %p94, %p95
      %p97 = scmp.le.s32.totalorder 1, %s11
      %p98 = scmp.lt.s32.totalorder %s11, 3
      %p99 = pnand %p97, %p98
      %p100 = pneg %p99
      // Predicated region
      $region9: #{tpu_custom_call.1} parent=5 // pred_check
        _
      $region10: #{tpu_custom_call.1} parent=5 // pred_check_branch
        %102 = sbr.rel (%p99) target = $region12
      $region11: #{tpu_custom_call.1} parent=5 // pred_region
        %s103 = ssub.s32 %s11, 1
      $region12: #{tpu_custom_call.1} parent=5 // pred_fallthru
        _
      %p104 = scmp.lt.s32.totalorder %s11, 2
      // Predicated region
      $region13: #{tpu_custom_call.1} parent=5 // pred_check
        %p105 = pneg %p104
      $region14: #{tpu_custom_call.1} parent=5 // pred_check_branch
        %107 = sbr.rel (%p105) target = $region16
      $region15: #{tpu_custom_call.1} parent=5 // pred_region
        // Predicated region
        $region17: #{tpu_custom_call.1} parent=15 // pred_check
          %p108 = pneg %p31
        $region18: #{tpu_custom_call.1} parent=15 // pred_check_branch
          %110 = sbr.rel (%p108) target = $region20
        $region19: #{tpu_custom_call.1} parent=15 // pred_region
          %p111 = scmp.lt.s32.totalorder %s11, 1
          %s112 = scalar_select %p111, %s11, 1
          %s113 = smul.addr %s112, 8
          %s114 = scalar_lea.vmem %s0, %s113
        $region20: #{tpu_custom_call.1} parent=15 // pred_fallthru
          _
        // Predicated region
        $region21: #{tpu_custom_call.1} parent=15 // pred_check
          %p115 = pneg %p57
        $region22: #{tpu_custom_call.1} parent=15 // pred_check_branch
          %117 = sbr.rel (%p115) target = $region24
        $region23: #{tpu_custom_call.1} parent=15 // pred_region
          %p118 = scmp.lt.s32.totalorder %s11, 624
          %s119 = scalar_select %p118, %s11, 624
          %s120 = smul.addr %s119, 8
          %s121 = scalar_lea.vmem %s1, %s120
        $region24: #{tpu_custom_call.1} parent=15 // pred_fallthru
          _
      $region16: #{tpu_custom_call.1} parent=5 // pred_fallthru
        _
      %p122 = scmp.le.s32.totalorder 1, %s11
      %p123 = scmp.lt.s32.totalorder %s11, 3
      %p124 = pnand %p122, %p123
      %p125 = pneg %p124
      // Predicated region
      $region25: #{tpu_custom_call.1} parent=5 // pred_check
        _
      $region26: #{tpu_custom_call.1} parent=5 // pred_check_branch
        %127 = sbr.rel (%p124) target = $region28
      $region27: #{tpu_custom_call.1} parent=5 // pred_region
        %s128 = ssub.s32 %s11, 1
        %p129 = scmp.lt.s32.totalorder %s16, 1
        %s130 = scalar_select %p129, %s16, 1
        %s131 = smul.addr %s130, 8
        %s132 = scalar_lea.vmem %s0, %s131
        %p133 = pneg %p37
        %p134 = pneg %p34
        %p135 = scmp.lt.s32.totalorder %s16, 624
        %s136 = scalar_select %p135, %s16, 624
        %s137 = smul.addr %s136, 8
        %s138 = scalar_lea.vmem %s1, %s137
        %p139 = pneg %p63
        %p140 = pneg %p60
        %p141 = pneg %p89
        %p142 = pneg %p86
        %s143 = sand.u32 %s76, 1
        %s144 = scalar_lea.sflag [#allocation3], %s143
        %s145 = sand.u32 %s76, 1
        %s146 = smul.addr %s145, 8
        %s147 = scalar_lea.vmem [#allocation2], %s146
        %p148 = scmp.lt.s32.totalorder %s16, 1
        %s149 = scalar_select %p148, %s16, 1
        %s150 = smul.addr %s149, 8
        %s151 = scalar_lea.vmem %s0, %s150
        %p152 = scmp.lt.s32.totalorder %s16, 624
        %s153 = scalar_select %p152, %s16, 624
        %s154 = smul.addr %s153, 8
        %s155 = scalar_lea.vmem %s1, %s154
        %v156 = vld [vmem:[%s151] sm:$0xff]
        %v157 = vld [vmem:[%s155] sm:$0xff]
        %159 = vrot.lane.b32.xlu0 %v157, 32
        %v160 = vpop.permute.xlu0 %159
        %vm162 = vcmask 261120
        %v163 = vsel %vm162, %v157, %v160
        %v164 = vadd.f32 %v156, %v163
        %vm165 = vcmask 523264
        %166 = vst.msk [vmem:[%s147] sm:$0xff] %vm165, %v164
        %s167 = sand.u32 %s76, 1
        %s168 = scalar_lea.sflag [#allocation3], %s167
        %s169 = sand.u32 %s76, 1
        %s170 = smul.addr %s169, 8
        %s171 = scalar_lea.vmem [#allocation2], %s170
        // Predicated region
        $region29: #{tpu_custom_call.1} parent=27 // pred_check
          %p172 = pneg %p86
        $region30: #{tpu_custom_call.1} parent=27 // pred_check_branch
          %174 = sbr.rel (%p172) target = $region32
        $region31: #{tpu_custom_call.1} parent=27 // pred_region
          %s176 = ssub.s32 128, 128
          %177 = vsyncadd %s168, %s176
          %s178 = smul.addr %s16, 128
          %s179 = scalar_lea.hbm %s2, %s178
          %s181 = sshll.u32 %s171, 4
          %s182 = int_to_ptr.vmem [resolvable:$true] %s181
          %184 = dma.vmem_to_hbm [thread:$0]  %s182, 128, %s179, %s168
        $region32: #{tpu_custom_call.1} parent=27 // pred_fallthru
          _
      $region28: #{tpu_custom_call.1} parent=5 // pred_fallthru
        _
      %p185 = scmp.le.s32.totalorder 2, %s11
      // Predicated region
      $region33: #{tpu_custom_call.1} parent=5 // pred_check
        %p186 = pneg %p185
      $region34: #{tpu_custom_call.1} parent=5 // pred_check_branch
        %188 = sbr.rel (%p186) target = $region36
      $region35: #{tpu_custom_call.1} parent=5 // pred_region
        %s189 = ssub.s32 %s11, 2
        // Predicated region
        $region37: #{tpu_custom_call.1} parent=35 // pred_check
          %p190 = pneg %p92
        $region38: #{tpu_custom_call.1} parent=35 // pred_check_branch
          %192 = sbr.rel (%p190) target = $region40
        $region39: #{tpu_custom_call.1} parent=35 // pred_region
          %s193 = sand.u32 %s77, 1
          %s194 = scalar_lea.sflag [#allocation3], %s193
          %s195 = sand.u32 %s77, 1
          %s196 = smul.addr %s195, 8
          %s197 = scalar_lea.vmem [#allocation2], %s196
          %198 = dma.done %s194, 128
        $region40: #{tpu_custom_call.1} parent=35 // pred_fallthru
          _
      $region36: #{tpu_custom_call.1} parent=5 // pred_fallthru
        _
    $region6: #{tpu_custom_call.1} parent=1 // loop_footer
      %s15 = sadd.s32 1, %s11
    $region7: #{tpu_custom_call.1} parent=1 // loop_footer_branch
      %10 = sbr.rel target = $region3
    $region8: #{tpu_custom_call.1} parent=1 // loop_exit
      _
    %199 = vsyncpa [#allocation3], 1
    %s200 = scalar_lea.sflag [#allocation3], 1
    %201 = vsyncpa %s200, 1

</llo_original>
